<compile_context>
chip_gen: v5e
topology: v5e:2x2
jax: 0.10.0
libtpu: 0.0.40
codegen_flags: <defaults>
</compile_context>

<pallas_src>
import jax
import jax.numpy as jnp
from jax.experimental import pallas as pl
from jax.experimental.pallas import tpu as pltpu


def cls_token_kernel(x_ref, row0_ref, pos_rest_ref, o_ref):
    """Prepend the (pre-added) cls row and add the positional embedding.

    x_ref:        (Bb, N,   Ct)  input tokens for Bb batch elements
    row0_ref:     (1,  1,   Ct)  cls_token + pos[0]  (loop-invariant, resident)
    pos_rest_ref: (1,  N,   Ct)  pos[1:N+1]          (loop-invariant, resident)
    o_ref:        (Bb, N+1, Ct)
    """
    bb = x_ref.shape[0]
    ct = x_ref.shape[2]
    # Rows 1..N: x + pos[1:], stored directly into the output sub-slice.
    # No concatenate -> no (Bb, N+1, Ct) VMEM temp, roughly half the in-core
    # vst/vld traffic. The sublane offset-1 store is cheap when Ct is
    # lane-dense (>=128).
    o_ref[:, 1:, :] = x_ref[...] + pos_rest_ref[...]
    # Row 0: precomputed cls_token + pos[0], broadcast over the batch tile.
    o_ref[:, 0:1, :] = jnp.broadcast_to(row0_ref[...], (bb, 1, ct))


def _pick_tiles(B, N, C, itemsize, budget_bytes=12 * 1024 * 1024):
    """Pick (batch_tile, channel_tile).

    budget_bytes bounds the PIPELINED footprint: 2x (double-buffered) x-block
    plus 2x out-block. 12 MiB keeps us safely under v5e's 16 MiB default scoped
    VMEM limit (v6e/v7x defaults are 32 MiB); the resident cls/pos blocks are
    negligible.
    """

    def footprint(bb, tc):
        # double-buffered input block + double-buffered output block
        return 2 * bb * (N * tc + (N + 1) * tc) * itemsize

    # --- channel tile: only split C when it is lane-dense (multiple of 128) and
    # a single batch element does not fit the budget.
    tc = C
    if C % 128 == 0 and footprint(1, C) > budget_bytes:
        tc = 128
        for cand in range(C // 128, 0, -1):
            t = cand * 128
            if C % t == 0 and footprint(1, t) <= budget_bytes:
                tc = t
                break

    # --- batch tile: divisors of B whose footprint fits; prefer an even number
    # of grid steps so v7x's two TensorCores stay balanced, tie-break by the
    # largest tile.
    fits = [d for d in range(1, B + 1) if B % d == 0 and footprint(d, tc) <= budget_bytes]
    if not fits:
        fits = [1]
    even_steps = [d for d in fits if (B // d) % 2 == 0]
    bb = max(even_steps) if even_steps else max(fits)

    # If everything fits in a single grid step, split (when the block is big
    # enough to be worth it) so both TensorCores get work.
    block_bytes = bb * (2 * N + 1) * tc * itemsize
    if B // bb == 1 and C // tc == 1 and block_bytes >= (1 << 21):
        if bb % 2 == 0:
            bb //= 2
        elif C % 256 == 0:
            tc = C // 2
    return bb, tc


def cls_token_forward(x, cls_token, pos_embedding):
    """x: (B, N, C), cls_token: (1, 1, C), pos_embedding: (1, num_patches+1, C)."""
    B, N, C = x.shape
    pos = pos_embedding[:, : N + 1, :].astype(x.dtype)
    # Loop-invariant work hoisted to the wrapper (done once by XLA, not per step).
    # PyTorch performs the += in x's dtype after the cat, so this matches exactly.
    row0 = cls_token.astype(x.dtype) + pos[:, :1, :]   # (1, 1, C): cls + pos[0]
    pos_rest = pos[:, 1:, :]                            # (1, N, C): pos[1:N+1]

    bb, tc = _pick_tiles(B, N, C, jnp.dtype(x.dtype).itemsize)
    grid = (B // bb, C // tc)

    # TODO(synk): add a sequence-axis tile (pl.when-guarded cls row) as a further
    # fallback for extremely long N when neither batch nor channel splitting fits.
    grid_spec = pltpu.PrefetchScalarGridSpec(
        num_scalar_prefetch=0,
        grid=grid,
        in_specs=[
            pl.BlockSpec((bb, N, tc), lambda b, c: (b, 0, c)),
            # Constant batch/seq index -> these small blocks stay resident in VMEM.
            pl.BlockSpec((1, 1, tc), lambda b, c: (0, 0, c)),
            pl.BlockSpec((1, N, tc), lambda b, c: (0, 0, c)),
        ],
        out_specs=pl.BlockSpec((bb, N + 1, tc), lambda b, c: (b, 0, c)),
    )

    return pl.pallas_call(
        cls_token_kernel,
        out_shape=jax.ShapeDtypeStruct((B, N + 1, C), x.dtype),
        grid_spec=grid_spec,
        compiler_params=pltpu.CompilerParams(
            dimension_semantics=("parallel", "parallel"),
        ),
    )(x, row0, pos_rest)


if __name__ == "__main__":
    # Small shapes consistent with the module: frame_rate (seq) = 8, inp_dim = 32.
    B, N, C = 2, 8, 32
    frame_rate, inp_dim = N, C

    key = jax.random.PRNGKey(0)
    kx, kcls, kpos = jax.random.split(key, 3)

    x = jax.random.normal(kx, (B, N, C), dtype=jnp.float32)
    # Deterministic parameter init (matches nn.Parameter(torch.randn(...)) shapes).
    cls_token = jax.random.normal(kcls, (1, 1, inp_dim), dtype=jnp.float32)
    pos_embedding = jax.random.normal(kpos, (1, frame_rate + 1, inp_dim), dtype=jnp.float32)

    out = cls_token_forward(x, cls_token, pos_embedding)
    out = jax.block_until_ready(out)

    # Pure-JAX reference check.
    ref = jnp.concatenate([jnp.broadcast_to(cls_token, (B, 1, C)), x], axis=1)
    ref = ref + pos_embedding[:, : N + 1]
    assert out.shape == (B, N + 1, C)
    assert jnp.allclose(out, ref, atol=1e-6), "mismatch vs reference"

    print("KERNEL_OK")
</pallas_src>

<mosaic_0001>
module attributes {stable_mosaic.version = 11 : i64} {
  func.func @cls_token_kernel(%arg0: i32, %arg1: i32, %arg2: memref<1x8x32xf32, #tpu.memory_space<vmem>>, %arg3: memref<1x1x32xf32, #tpu.memory_space<vmem>>, %arg4: memref<1x8x32xf32, #tpu.memory_space<vmem>>, %arg5: memref<1x9x32xf32, #tpu.memory_space<vmem>>) attributes {dimension_semantics = [#tpu.dimension_semantics<parallel>, #tpu.dimension_semantics<parallel>], iteration_bounds = array<i64: 2, 1>, scalar_prefetch = 0 : i64, scratch_operands = 0 : i64, tpu.core_type = #tpu.core_type<tc>, window_params = [{transform_indices = @transform_0, window_bounds = array<i64: 1, 8, 32>}, {transform_indices = @transform_1, window_bounds = array<i64: 1, 1, 32>}, {transform_indices = @transform_2, window_bounds = array<i64: 1, 8, 32>}, {transform_indices = @transform_3, window_bounds = array<i64: 1, 9, 32>}]} {
    %c0 = arith.constant 0 : index
    %c0_0 = arith.constant 0 : index
    %c0_1 = arith.constant 0 : index
    %0 = vector.load %arg2[%c0, %c0_0, %c0_1] : memref<1x8x32xf32, #tpu.memory_space<vmem>>, vector<1x8x32xf32>
    %c0_2 = arith.constant 0 : index
    %c0_3 = arith.constant 0 : index
    %c0_4 = arith.constant 0 : index
    %1 = vector.load %arg4[%c0_2, %c0_3, %c0_4] : memref<1x8x32xf32, #tpu.memory_space<vmem>>, vector<1x8x32xf32>
    %2 = arith.addf %0, %1 : vector<1x8x32xf32>
    %c0_5 = arith.constant 0 : index
    %c1 = arith.constant 1 : index
    %c0_6 = arith.constant 0 : index
    %3 = vector.load %arg5[%c0_5, %c1, %c0_6] : memref<1x9x32xf32, #tpu.memory_space<vmem>>, vector<1x8x32xf32>
    tpu.vector_store %arg5[%c0_5, %c1, %c0_6], %2 {strides = array<i32>} : memref<1x9x32xf32, #tpu.memory_space<vmem>>, vector<1x8x32xf32>,
    %c0_7 = arith.constant 0 : index
    %c0_8 = arith.constant 0 : index
    %c0_9 = arith.constant 0 : index
    %4 = vector.load %arg3[%c0_7, %c0_8, %c0_9] : memref<1x1x32xf32, #tpu.memory_space<vmem>>, vector<1x1x32xf32>
    %c0_10 = arith.constant 0 : index
    %c0_11 = arith.constant 0 : index
    %c0_12 = arith.constant 0 : index
    %5 = vector.load %arg5[%c0_10, %c0_11, %c0_12] : memref<1x9x32xf32, #tpu.memory_space<vmem>>, vector<1x1x32xf32>
    tpu.vector_store %arg5[%c0_10, %c0_11, %c0_12], %4 {strides = array<i32>} : memref<1x9x32xf32, #tpu.memory_space<vmem>>, vector<1x1x32xf32>,
    return
  }
  func.func @transform_0(%arg0: i32, %arg1: i32) -> (i32, i32, i32) {
    %c0_i32 = arith.constant 0 : i32
    %c0_i32_0 = arith.constant 0 : i32
    return %arg0, %c0_i32, %arg1 : i32, i32, i32
  }
  func.func @transform_1(%arg0: i32, %arg1: i32) -> (i32, i32, i32) {
    %c0_i32 = arith.constant 0 : i32
    %c0_i32_0 = arith.constant 0 : i32
    %c0_i32_1 = arith.constant 0 : i32
    return %c0_i32, %c0_i32_0, %arg1 : i32, i32, i32
  }
  func.func @transform_2(%arg0: i32, %arg1: i32) -> (i32, i32, i32) {
    %c0_i32 = arith.constant 0 : i32
    %c0_i32_0 = arith.constant 0 : i32
    %c0_i32_1 = arith.constant 0 : i32
    return %c0_i32, %c0_i32_0, %arg1 : i32, i32, i32
  }
  func.func @transform_3(%arg0: i32, %arg1: i32) -> (i32, i32, i32) {
    %c0_i32 = arith.constant 0 : i32
    %c0_i32_0 = arith.constant 0 : i32
    return %arg0, %c0_i32, %arg1 : i32, i32, i32
  }
}

</mosaic_0001>

<llo_original>
// kernel: tpu_custom_call.1
$region0: #{tpu_custom_call.1}
  #allocation0 [shape = 'u32[]', space=smem, size = 0x4, offset = 0x4, fixed_abs, tag = 'smem constant byte address 0x4 - core index']
  #allocation1 [shape = 'u32[72,128]{1,0:T(1,128)}', space=vmem, size = 0x9000, scoped, tag = 'internal scratch']
  %s0 = inlined_call_operand.hbm [shape: f32[2,8,32], index: 0, kind: input, shape index: {}]
  %s1 = inlined_call_operand.hbm [shape: f32[1,1,32], index: 1, kind: input, shape index: {}]
  %s2 = inlined_call_operand.hbm [shape: f32[1,8,32], index: 2, kind: input, shape index: {}]
  %s3 = inlined_call_operand.vmem [shape: f32[2,9,32], index: 3, kind: output, shape index: {}]
  %s4 = sld [smem:[#allocation0]]
  $region57: #{tpu_custom_call.1} parent=0
    _
  %s6 = ssub.s32 1, %s4
  %s7 = scalar_select 0, %s6, %s4
  $region1: #{tpu_custom_call.1} parent=0
    #allocation2 [shape = 'u8[8192]{0}', space=vmem, size = 0x2000, scoped, tag = 'input window, operand 0']
    #allocation3 [shape = 's32[2]{0}', space=sflag, size = 0x8, scoped, tag = 'scoped memory for tpu_custom_call.1']
    #allocation4 [shape = 'u8[512]{0}', space=vmem, size = 0x400, scoped, tag = 'input window, operand 1, single buffered']
    #allocation5 [shape = 's32[1]{0}', space=sflag, size = 0x4, scoped, tag = 'scoped memory for tpu_custom_call.1']
    #allocation6 [shape = 'u8[4096]{0}', space=vmem, size = 0x1000, scoped, tag = 'input window, operand 2, single buffered']
    %8 = vsyncpa [#allocation3], 0
    %s9 = scalar_lea.sflag [#allocation3], 1
    %10 = vsyncpa %s9, 0
    %11 = vsyncpa [#allocation5], 0
    loop: start=0, step=1, limit=4
    $region2: #{tpu_custom_call.1} parent=1 // loop_pre_header
      _
    $region3: #{tpu_custom_call.1} parent=1 // loop_header
      %s13 = sphi 0, %s17
      %p14 = scmp.ge.s32.totalorder %s13, 4
      %s20 = sphi 0, %s32
      %s21 = sphi 0, %s28
      %s22 = sphi 0, %s20
      %s23 = sphi 0, %s21
      %s24 = sphi 0, %s22
      %s25 = sphi 0, %s23
      %s37 = sphi 0, %s39
      %s40 = sphi 0, %s37
      %s41 = sphi 0, %s40
      %s57 = sphi 0, %s41
      %s63 = sphi 0, %s65
      %s66 = sphi 0, %s63
      %s67 = sphi 0, %s66
      %s83 = sphi 0, %s67
      %s89 = sphi 0, %s91
      %s92 = sphi 0, %s89
      %s93 = sphi 0, %s92
      %s109 = sphi 0, %s93
      %s117 = sphi 0, %s119
      %s120 = sphi 0, %s117
      %s121 = sphi 0, %s120
      %s137 = sphi 0, %s121
    $region4: #{tpu_custom_call.1} parent=1 // loop_header_branch
      %16 = sbr.rel (%p14) target = $region8
    $region5: #{tpu_custom_call.1} parent=1 // loop_body
      %s18 = ssub.s32 %s13, 1
      %s19 = ssub.s32 %s13, 2
      %s26 = sadd.s32 1, %s21
      %p27 = scmp.ge.s32.totalorder %s26, 1
      %s28 = scalar_select %p27, 0, %s26
      %s29 = sadd.s32 1, %s20
      %s30 = scalar_select %p27, %s29, %s20
      %p31 = scmp.ge.s32.totalorder %s30, 2
      %s32 = scalar_select %p31, 0, %s30
      %s33 = ssub.s32 %s20, %s32
      %s34 = ssub.s32 %s21, %s28
      %s35 = sor.u32 %s33, %s34
      %p36 = scmp.eq.s32.totalorder %s35, 0
      %s38 = sadd.s32 %s37, 1
      %s39 = scalar_select %p36, %s37, %s38
      %p42 = pneg %p36
      %p43 = scmp.eq.s32.totalorder %s13, 1
      %p44 = por %p42, %p43
      %p45 = scmp.ne.s32.totalorder %s37, %s40
      %p46 = scmp.eq.s32.totalorder %s13, 0
      %p47 = por %p45, %p46
      %p48 = scmp.ne.s32.totalorder %s37, %s40
      %p49 = scmp.eq.s32.totalorder %s18, 1
      %p50 = por %p48, %p49
      %p51 = scmp.ne.s32.totalorder %s40, %s41
      %p52 = scmp.eq.s32.totalorder %s18, 0
      %p53 = por %p51, %p52
      %p54 = scmp.ne.s32.totalorder %s40, %s41
      %p55 = scmp.eq.s32.totalorder %s19, 1
      %p56 = por %p54, %p55
      %p58 = scmp.ne.s32.totalorder %s41, %s57
      %p59 = scmp.eq.s32.totalorder %s19, 0
      %p60 = por %p58, %p59
      %s61 = ssub.s32 %s21, %s28
      %p62 = scmp.eq.s32.totalorder %s61, 0
      %s64 = sadd.s32 %s63, 1
      %s65 = scalar_select %p62, %s63, %s64
      %p68 = pneg %p62
      %p69 = scmp.eq.s32.totalorder %s13, 1
      %p70 = por %p68, %p69
      %p71 = scmp.ne.s32.totalorder %s63, %s66
      %p72 = scmp.eq.s32.totalorder %s13, 0
      %p73 = por %p71, %p72
      %p74 = scmp.ne.s32.totalorder %s63, %s66
      %p75 = scmp.eq.s32.totalorder %s18, 1
      %p76 = por %p74, %p75
      %p77 = scmp.ne.s32.totalorder %s66, %s67
      %p78 = scmp.eq.s32.totalorder %s18, 0
      %p79 = por %p77, %p78
      %p80 = scmp.ne.s32.totalorder %s66, %s67
      %p81 = scmp.eq.s32.totalorder %s19, 1
      %p82 = por %p80, %p81
      %p84 = scmp.ne.s32.totalorder %s67, %s83
      %p85 = scmp.eq.s32.totalorder %s19, 0
      %p86 = por %p84, %p85
      %s87 = ssub.s32 %s21, %s28
      %p88 = scmp.eq.s32.totalorder %s87, 0
      %s90 = sadd.s32 %s89, 1
      %s91 = scalar_select %p88, %s89, %s90
      %p94 = pneg %p88
      %p95 = scmp.eq.s32.totalorder %s13, 1
      %p96 = por %p94, %p95
      %p97 = scmp.ne.s32.totalorder %s89, %s92
      %p98 = scmp.eq.s32.totalorder %s13, 0
      %p99 = por %p97, %p98
      %p100 = scmp.ne.s32.totalorder %s89, %s92
      %p101 = scmp.eq.s32.totalorder %s18, 1
      %p102 = por %p100, %p101
      %p103 = scmp.ne.s32.totalorder %s92, %s93
      %p104 = scmp.eq.s32.totalorder %s18, 0
      %p105 = por %p103, %p104
      %p106 = scmp.ne.s32.totalorder %s92, %s93
      %p107 = scmp.eq.s32.totalorder %s19, 1
      %p108 = por %p106, %p107
      %p110 = scmp.ne.s32.totalorder %s93, %s109
      %p111 = scmp.eq.s32.totalorder %s19, 0
      %p112 = por %p110, %p111
      %s113 = ssub.s32 %s20, %s32
      %s114 = ssub.s32 %s21, %s28
      %s115 = sor.u32 %s113, %s114
      %p116 = scmp.eq.s32.totalorder %s115, 0
      %s118 = sadd.s32 %s117, 1
      %s119 = scalar_select %p116, %s117, %s118
      %p122 = pneg %p116
      %p123 = scmp.eq.s32.totalorder %s13, 1
      %p124 = por %p122, %p123
      %p125 = scmp.ne.s32.totalorder %s117, %s120
      %p126 = scmp.eq.s32.totalorder %s13, 0
      %p127 = por %p125, %p126
      %p128 = scmp.ne.s32.totalorder %s117, %s120
      %p129 = scmp.eq.s32.totalorder %s18, 1
      %p130 = por %p128, %p129
      %p131 = scmp.ne.s32.totalorder %s120, %s121
      %p132 = scmp.eq.s32.totalorder %s18, 0
      %p133 = por %p131, %p132
      %p134 = scmp.ne.s32.totalorder %s120, %s121
      %p135 = scmp.eq.s32.totalorder %s19, 1
      %p136 = por %p134, %p135
      %p138 = scmp.ne.s32.totalorder %s121, %s137
      %p139 = scmp.eq.s32.totalorder %s19, 0
      %p140 = por %p138, %p139
      %p141 = scmp.le.s32.totalorder 1, %s13
      %p142 = scmp.lt.s32.totalorder %s13, 3
      %p143 = pnand %p141, %p142
      %p144 = pneg %p143
      // Predicated region
      $region9: #{tpu_custom_call.1} parent=5 // pred_check
        _
      $region10: #{tpu_custom_call.1} parent=5 // pred_check_branch
        %146 = sbr.rel (%p143) target = $region12
      $region11: #{tpu_custom_call.1} parent=5 // pred_region
        %s147 = ssub.s32 %s13, 1
        // Predicated region
        $region13: #{tpu_custom_call.1} parent=11 // pred_check
          %p148 = pneg %p79
        $region14: #{tpu_custom_call.1} parent=11 // pred_check_branch
          %150 = sbr.rel (%p148) target = $region16
        $region15: #{tpu_custom_call.1} parent=11 // pred_region
          %152 = vsyncadd [#allocation5], 0
          %s153 = scalar_lea.hbm %s1, %s23
          %s155 = sshll.u32 %s153, 4
          %s156 = int_to_ptr.hbm [resolvable:$true] %s155
          %s157 = sshll.u32 [#allocation4], 4
          %s158 = int_to_ptr.vmem [resolvable:$true] %s157
          %160 = dma.hbm_to_vmem [thread:$0]  %s156, 16, %s158, [#allocation5]
        $region16: #{tpu_custom_call.1} parent=11 // pred_fallthru
          _
        // Predicated region
        $region17: #{tpu_custom_call.1} parent=11 // pred_check
          %p161 = pneg %p105
        $region18: #{tpu_custom_call.1} parent=11 // pred_check_branch
          %163 = sbr.rel (%p161) target = $region20
        $region19: #{tpu_custom_call.1} parent=11 // pred_region
          %165 = vsyncadd [#allocation5], 0
          %s166 = smul.addr %s23, 8
          %s167 = scalar_lea.hbm %s2, %s166
          %s169 = sshll.u32 %s167, 4
          %s170 = int_to_ptr.hbm [resolvable:$true] %s169
          %s171 = sshll.u32 [#allocation6], 4
          %s172 = int_to_ptr.vmem [resolvable:$true] %s171
          %174 = dma.hbm_to_vmem [thread:$0]  %s170, 128, %s172, [#allocation5]
        $region20: #{tpu_custom_call.1} parent=11 // pred_fallthru
          _
      $region12: #{tpu_custom_call.1} parent=5 // pred_fallthru
        _
      %p175 = scmp.lt.s32.totalorder %s13, 2
      // Predicated region
      $region21: #{tpu_custom_call.1} parent=5 // pred_check
        %p176 = pneg %p175
      $region22: #{tpu_custom_call.1} parent=5 // pred_check_branch
        %178 = sbr.rel (%p176) target = $region24
      $region23: #{tpu_custom_call.1} parent=5 // pred_region
        // Predicated region
        $region25: #{tpu_custom_call.1} parent=23 // pred_check
          %p179 = pneg %p47
        $region26: #{tpu_custom_call.1} parent=23 // pred_check_branch
          %181 = sbr.rel (%p179) target = $region28
        $region27: #{tpu_custom_call.1} parent=23 // pred_region
          %s182 = sand.u32 %s37, 1
          %s183 = scalar_lea.sflag [#allocation3], %s182
          %s184 = sand.u32 %s37, 1
          %s185 = smul.addr %s184, 8
          %s186 = scalar_lea.vmem [#allocation2], %s185
          %188 = vsyncadd %s183, 0
          %s189 = sadd.s32 %s21, %s20
          %s190 = smul.addr %s189, 8
          %s191 = scalar_lea.hbm %s0, %s190
          %s193 = sshll.u32 %s191, 4
          %s194 = int_to_ptr.hbm [resolvable:$true] %s193
          %s195 = sshll.u32 %s186, 4
          %s196 = int_to_ptr.vmem [resolvable:$true] %s195
          %198 = dma.hbm_to_vmem [thread:$0]  %s194, 128, %s196, %s183
        $region28: #{tpu_custom_call.1} parent=23 // pred_fallthru
          _
      $region24: #{tpu_custom_call.1} parent=5 // pred_fallthru
        _
      %p199 = scmp.le.s32.totalorder 1, %s13
      %p200 = scmp.lt.s32.totalorder %s13, 3
      %p201 = pnand %p199, %p200
      %p202 = pneg %p201
      // Predicated region
      $region29: #{tpu_custom_call.1} parent=5 // pred_check
        _
      $region30: #{tpu_custom_call.1} parent=5 // pred_check_branch
        %204 = sbr.rel (%p201) target = $region32
      $region31: #{tpu_custom_call.1} parent=5 // pred_region
        %s205 = ssub.s32 %s13, 1
        %s206 = sand.u32 %s40, 1
        %s207 = scalar_lea.sflag [#allocation3], %s206
        %s208 = sand.u32 %s40, 1
        %s209 = smul.addr %s208, 8
        %s210 = scalar_lea.vmem [#allocation2], %s209
        // Predicated region
        $region33: #{tpu_custom_call.1} parent=31 // pred_check
          %p211 = pneg %p53
        $region34: #{tpu_custom_call.1} parent=31 // pred_check_branch
          %213 = sbr.rel (%p211) target = $region36
        $region35: #{tpu_custom_call.1} parent=31 // pred_region
          %215 = dma.done %s207, 128
        $region36: #{tpu_custom_call.1} parent=31 // pred_fallthru
          _
        // Predicated region
        $region37: #{tpu_custom_call.1} parent=31 // pred_check
          %p216 = pneg %p79
        $region38: #{tpu_custom_call.1} parent=31 // pred_check_branch
          %218 = sbr.rel (%p216) target = $region40
        $region39: #{tpu_custom_call.1} parent=31 // pred_region
          %220 = dma.done [#allocation5], 16
        $region40: #{tpu_custom_call.1} parent=31 // pred_fallthru
          _
        // Predicated region
        $region41: #{tpu_custom_call.1} parent=31 // pred_check
          %p221 = pneg %p105
        $region42: #{tpu_custom_call.1} parent=31 // pred_check_branch
          %223 = sbr.rel (%p221) target = $region44
        $region43: #{tpu_custom_call.1} parent=31 // pred_region
          %225 = dma.done [#allocation5], 128
        $region44: #{tpu_custom_call.1} parent=31 // pred_fallthru
          _
        %s226 = sand.u32 %s40, 1
        %s227 = scalar_lea.sflag [#allocation3], %s226
        %s228 = sand.u32 %s40, 1
        %s229 = smul.addr %s228, 8
        %s230 = scalar_lea.vmem [#allocation2], %s229
        %p231 = pneg %p53
        %p232 = pneg %p50
        %p233 = pneg %p79
        %p234 = pneg %p76
        %p235 = pneg %p105
        %p236 = pneg %p102
        %p237 = pneg %p133
        %p238 = pneg %p130
        %p239 = scmp.lt.s32.totalorder %s22, 1
        %s240 = scalar_select %p239, %s22, 1
        %p241 = scmp.lt.s32.totalorder %s23, 0
        %s242 = scalar_select %p241, %s23, 0
        %s243 = smul.addr %s240, 2
        %s244 = sadd.s32 %s242, %s243
        %s245 = smul.addr %s244, 8
        %s246 = scalar_lea.vmem %s3, %s245
        %p247 = scmp.lt.s32.totalorder %s22, 1
        %s248 = scalar_select %p247, %s22, 1
        %p249 = scmp.lt.s32.totalorder %s23, 0
        %s250 = scalar_select %p249, %s23, 0
        %s251 = smul.addr %s248, 2
        %s252 = sadd.s32 %s250, %s251
        %s253 = smul.addr %s252, 8
        %s254 = scalar_lea.vmem %s3, %s253
        %v255 = vld [vmem:[%s210] sm:$0xff]
        %v256 = vld [vmem:[#allocation6] sm:$0xff]
        %v257 = vadd.f32 %v255, %v256
        %vm258 = vcmask 261120
        %259 = vst.msk [vmem:[%s254 + $0x1] sm:$0xff] %vm258, %v257
        %v260 = vld [vmem:[#allocation4] sm:$0x1]
        %vm261 = vcmask 253952
        %262 = vst.msk [vmem:[%s254] sm:$0x1] %vm261, %v260
        %p263 = scmp.lt.s32.totalorder %s22, 1
        %s264 = scalar_select %p263, %s22, 1
        %p265 = scmp.lt.s32.totalorder %s23, 0
        %s266 = scalar_select %p265, %s23, 0
        %s267 = smul.addr %s264, 2
        %s268 = sadd.s32 %s266, %s267
        %s269 = smul.addr %s268, 8
        %s270 = scalar_lea.vmem %s3, %s269
        // Predicated region
        $region45: #{tpu_custom_call.1} parent=31 // pred_check
          %p271 = pneg %p130
        $region46: #{tpu_custom_call.1} parent=31 // pred_check_branch
          %273 = sbr.rel (%p271) target = $region48
        $region47: #{tpu_custom_call.1} parent=31 // pred_region
          _
        $region48: #{tpu_custom_call.1} parent=31 // pred_fallthru
          _
      $region32: #{tpu_custom_call.1} parent=5 // pred_fallthru
        _
      %p274 = scmp.le.s32.totalorder 2, %s13
      // Predicated region
      $region49: #{tpu_custom_call.1} parent=5 // pred_check
        %p275 = pneg %p274
      $region50: #{tpu_custom_call.1} parent=5 // pred_check_branch
        %277 = sbr.rel (%p275) target = $region52
      $region51: #{tpu_custom_call.1} parent=5 // pred_region
        %s278 = ssub.s32 %s13, 2
        // Predicated region
        $region53: #{tpu_custom_call.1} parent=51 // pred_check
          %p279 = pneg %p136
        $region54: #{tpu_custom_call.1} parent=51 // pred_check_branch
          %281 = sbr.rel (%p279) target = $region56
        $region55: #{tpu_custom_call.1} parent=51 // pred_region
          %p282 = scmp.lt.s32.totalorder %s24, 1
          %s283 = scalar_select %p282, %s24, 1
          %p284 = scmp.lt.s32.totalorder %s25, 0
          %s285 = scalar_select %p284, %s25, 0
          %s286 = smul.addr %s283, 2
          %s287 = sadd.s32 %s285, %s286
          %s288 = smul.addr %s287, 8
          %s289 = scalar_lea.vmem %s3, %s288
        $region56: #{tpu_custom_call.1} parent=51 // pred_fallthru
          _
      $region52: #{tpu_custom_call.1} parent=5 // pred_fallthru
        _
    $region6: #{tpu_custom_call.1} parent=1 // loop_footer
      %s17 = sadd.s32 1, %s13
    $region7: #{tpu_custom_call.1} parent=1 // loop_footer_branch
      %12 = sbr.rel target = $region3
    $region8: #{tpu_custom_call.1} parent=1 // loop_exit
      _
    %290 = vsyncpa [#allocation3], 1
    %s291 = scalar_lea.sflag [#allocation3], 1
    %292 = vsyncpa %s291, 1
    %293 = vsyncpa [#allocation5], 1

</llo_original>
